<compile_context>
chip_gen: v7x
topology: tpu7x:2x2x1
jax: 0.10.0
libtpu: 0.0.40
codegen_flags: <defaults>
</compile_context>

<pallas_src>
import functools

import jax
import jax.numpy as jnp
from jax.experimental import pallas as pl
from jax.experimental.pallas import tpu as pltpu


_TARGET_F32_TILE_BYTES = 4 * 1024 * 1024      # ~4 MiB f32 working tile per grid step
_VMEM_FOOTPRINT_BUDGET = 36 * 1024 * 1024     # 2x in + 2x out (double-buffered) + f32 temps
_VMEM_LIMIT_BYTES = 48 * 1024 * 1024          # scoped VMEM limit (safe on v7x's 64 MiB)


def _round_up(v, m):
    return ((v + m - 1) // m) * m


def _sublane_multiple(itemsize):
    # Sub-32-bit dtypes pack along sublanes: f32 -> 8, bf16 -> 16, int8/fp8 -> 32.
    return {4: 8, 2: 16, 1: 32}.get(itemsize, 8)


def _layernorm_rows_kernel(x_ref, w_ref, b_ref, o_ref, *, eps, inv_c):
    # x_ref: (TR, C); w_ref/b_ref: (1, C) float32; reduce over the lane axis.
    x = x_ref[...].astype(jnp.float32)
    s1 = jnp.sum(x, axis=-1, keepdims=True)
    s2 = jnp.sum(x * x, axis=-1, keepdims=True)
    mean = s1 * inv_c
    # One-pass variance; clamp avoids tiny negative values from cancellation.
    var = jnp.maximum(s2 * inv_c - mean * mean, 0.0)
    inv = jax.lax.rsqrt(var + eps)
    y = (x - mean) * inv * w_ref[...] + b_ref[...]
    o_ref[...] = y.astype(o_ref.dtype)


def _layernorm_cols_kernel(x_ref, w_ref, b_ref, o_ref, *, eps, inv_c):
    # x_ref: (C, TC); w_ref/b_ref: (C, 1) float32; reduce over the sublane axis.
    x = x_ref[...].astype(jnp.float32)
    s1 = jnp.sum(x, axis=0, keepdims=True)
    s2 = jnp.sum(x * x, axis=0, keepdims=True)
    mean = s1 * inv_c
    var = jnp.maximum(s2 * inv_c - mean * mean, 0.0)
    inv = jax.lax.rsqrt(var + eps)
    y = (x - mean) * inv * w_ref[...] + b_ref[...]
    o_ref[...] = y.astype(o_ref.dtype)


def layer_norm(x, weight, bias, eps=1e-5):
    """LayerNorm over the last dim, matching torch.nn.functional.layer_norm."""
    c_in = x.shape[-1]
    assert weight.shape == (c_in,) and bias.shape == (c_in,)
    orig_shape = x.shape
    rows = 1
    for s in orig_shape[:-1]:
        rows *= s
    x2 = x.reshape(rows, c_in)

    itemsize = jnp.dtype(x.dtype).itemsize
    inv_c = 1.0 / float(c_in)
    # Per-row VMEM cost: double-buffered input + output (dtype) + ~3 f32 temporaries.
    per_row_bytes = c_in * (4 * itemsize + 3 * 4)

    w_f32 = weight.astype(jnp.float32)
    b_f32 = bias.astype(jnp.float32)

    cost = pl.CostEstimate(
        flops=8 * rows * c_in,
        transcendentals=rows,
        bytes_accessed=2 * rows * c_in * itemsize,
    )
    cparams = pltpu.CompilerParams(
        dimension_semantics=("parallel",),
        vmem_limit_bytes=_VMEM_LIMIT_BYTES,
    )

    # Lane-sparse channels (< 128): put rows on the 128-lane axis instead.
    use_transposed = c_in < 128

    if not use_transposed:
        sublane = _sublane_multiple(itemsize)
        # Target ~4 MiB of f32 working data per tile, capped by the VMEM budget.
        tr = max(sublane, _TARGET_F32_TILE_BYTES // (4 * c_in))
        tr = min(tr, max(sublane, _VMEM_FOOTPRINT_BUDGET // per_row_bytes))
        tr = min(tr, _round_up(rows, sublane))
        tr = _round_up(tr, sublane)          # round UP to the dtype's sublane multiple

        pad_rows = (-rows) % tr
        if pad_rows:
            x2 = jnp.pad(x2, ((0, pad_rows), (0, 0)))
        total_rows = x2.shape[0]

        kernel = functools.partial(_layernorm_rows_kernel, eps=eps, inv_c=inv_c)
        out = pl.pallas_call(
            kernel,
            out_shape=jax.ShapeDtypeStruct((total_rows, c_in), x.dtype),
            grid_spec=pltpu.PrefetchScalarGridSpec(
                num_scalar_prefetch=0,
                grid=(total_rows // tr,),
                in_specs=[
                    pl.BlockSpec((tr, c_in), lambda i: (i, 0)),
                    pl.BlockSpec((1, c_in), lambda i: (0, 0)),
                    pl.BlockSpec((1, c_in), lambda i: (0, 0)),
                ],
                out_specs=pl.BlockSpec((tr, c_in), lambda i: (i, 0)),
            ),
            compiler_params=cparams,
            cost_estimate=cost,
        )(x2, w_f32.reshape(1, c_in), b_f32.reshape(1, c_in))

        if pad_rows:
            out = out[:rows]
        return out.reshape(orig_shape)

    # Transposed path: rows go on the lane axis (128-multiple tiles), channels on sublanes.
    tc = max(128, _TARGET_F32_TILE_BYTES // (4 * c_in))
    tc = min(tc, max(128, _VMEM_FOOTPRINT_BUDGET // per_row_bytes))
    tc = min(tc, _round_up(rows, 128))
    tc = _round_up(tc, 128)

    pad_rows = (-rows) % tc
    if pad_rows:
        x2 = jnp.pad(x2, ((0, pad_rows), (0, 0)))
    total_rows = x2.shape[0]
    xT = x2.T  # (c_in, total_rows): wrapper-side layout plumbing for lane-dense stores

    kernel = functools.partial(_layernorm_cols_kernel, eps=eps, inv_c=inv_c)
    outT = pl.pallas_call(
        kernel,
        out_shape=jax.ShapeDtypeStruct((c_in, total_rows), x.dtype),
        grid_spec=pltpu.PrefetchScalarGridSpec(
            num_scalar_prefetch=0,
            grid=(total_rows // tc,),
            in_specs=[
                pl.BlockSpec((c_in, tc), lambda i: (0, i)),
                pl.BlockSpec((c_in, 1), lambda i: (0, 0)),
                pl.BlockSpec((c_in, 1), lambda i: (0, 0)),
            ],
            out_specs=pl.BlockSpec((c_in, tc), lambda i: (0, i)),
        ),
        compiler_params=cparams,
        cost_estimate=cost,
    )(xT, w_f32.reshape(c_in, 1), b_f32.reshape(c_in, 1))

    out = outT.T
    if pad_rows:
        out = out[:rows]
    return out.reshape(orig_shape)


def _reference(x, weight, bias, eps):
    xf = x.astype(jnp.float32)
    mean = jnp.mean(xf, axis=-1, keepdims=True)
    var = jnp.mean((xf - mean) ** 2, axis=-1, keepdims=True)
    y = (xf - mean) * jax.lax.rsqrt(var + eps) * weight.astype(jnp.float32) \
        + bias.astype(jnp.float32)
    return y.astype(x.dtype)


if __name__ == "__main__":
    key = jax.random.PRNGKey(0)
    eps = 1e-5

    # Case 1: openfold-style activation with small channel count (transposed path).
    c_in = 32
    x = jax.random.normal(key, (2, 8, 16, c_in), dtype=jnp.float32)
    weight = jnp.ones((c_in,), dtype=jnp.float32)     # module init: ones
    bias = jnp.zeros((c_in,), dtype=jnp.float32)      # module init: zeros
    out = jax.block_until_ready(layer_norm(x, weight, bias, eps=eps))
    ref = _reference(x, weight, bias, eps)
    assert jnp.allclose(out, ref, atol=1e-5, rtol=1e-5)

    # Case 2: lane-dense channel count (rows path).
    c_in2 = 128
    k1, k2, k3 = jax.random.split(jax.random.PRNGKey(0), 3)
    x2 = jax.random.normal(k1, (2, 8, c_in2), dtype=jnp.float32)
    w2 = 1.0 + 0.1 * jax.random.normal(k2, (c_in2,), dtype=jnp.float32)
    b2 = 0.1 * jax.random.normal(k3, (c_in2,), dtype=jnp.float32)
    out2 = jax.block_until_ready(layer_norm(x2, w2, b2, eps=eps))
    ref2 = _reference(x2, w2, b2, eps)
    assert jnp.allclose(out2, ref2, atol=1e-5, rtol=1e-5)

    print("KERNEL_OK")
</pallas_src>

<mosaic_0001>
module attributes {stable_mosaic.version = 11 : i64} {
  func.func @_layernorm_cols_kernel(%arg0: i32, %arg1: memref<32x256xf32, #tpu.memory_space<vmem>>, %arg2: memref<32x1xf32, #tpu.memory_space<vmem>>, %arg3: memref<32x1xf32, #tpu.memory_space<vmem>>, %arg4: memref<32x256xf32, #tpu.memory_space<vmem>>) attributes {dimension_semantics = [#tpu.dimension_semantics<parallel>], iteration_bounds = array<i64: 1>, scalar_prefetch = 0 : i64, scratch_operands = 0 : i64, tpu.core_type = #tpu.core_type<tc>, window_params = [{transform_indices = @transform_0, window_bounds = array<i64: 32, 256>}, {pipeline_mode = #tpu.pipeline_mode<synchronous>, transform_indices = @transform_1, window_bounds = array<i64: 32, 1>}, {pipeline_mode = #tpu.pipeline_mode<synchronous>, transform_indices = @transform_2, window_bounds = array<i64: 32, 1>}, {transform_indices = @transform_3, window_bounds = array<i64: 32, 256>}]} {
    %c0 = arith.constant 0 : index
    %c0_0 = arith.constant 0 : index
    %0 = vector.load %arg1[%c0, %c0_0] : memref<32x256xf32, #tpu.memory_space<vmem>>, vector<32x256xf32>
    %cst = arith.constant dense<0.000000e+00> : vector<256xf32>
    %1 = vector.multi_reduction <add>, %0, %cst [0] : vector<32x256xf32> to vector<256xf32>
    %2 = vector.shape_cast %1 : vector<256xf32> to vector<1x256xf32>
    %3 = arith.mulf %0, %0 : vector<32x256xf32>
    %cst_1 = arith.constant dense<0.000000e+00> : vector<256xf32>
    %4 = vector.multi_reduction <add>, %3, %cst_1 [0] : vector<32x256xf32> to vector<256xf32>
    %5 = vector.shape_cast %4 : vector<256xf32> to vector<1x256xf32>
    %cst_2 = arith.constant 3.125000e-02 : f32
    %6 = vector.broadcast %cst_2 : f32 to vector<1x256xf32>
    %7 = arith.mulf %2, %6 : vector<1x256xf32>
    %cst_3 = arith.constant 3.125000e-02 : f32
    %8 = vector.broadcast %cst_3 : f32 to vector<1x256xf32>
    %9 = arith.mulf %5, %8 : vector<1x256xf32>
    %10 = arith.mulf %7, %7 : vector<1x256xf32>
    %11 = arith.subf %9, %10 : vector<1x256xf32>
    %cst_4 = arith.constant 0.000000e+00 : f32
    %12 = vector.broadcast %cst_4 : f32 to vector<1x256xf32>
    %13 = arith.maximumf %11, %12 : vector<1x256xf32>
    %cst_5 = arith.constant 9.99999974E-6 : f32
    %14 = vector.broadcast %cst_5 : f32 to vector<1x256xf32>
    %15 = arith.addf %13, %14 : vector<1x256xf32>
    %16 = math.rsqrt %15 : vector<1x256xf32>
    %17 = vector.broadcast %7 : vector<1x256xf32> to vector<32x256xf32>
    %18 = arith.subf %0, %17 : vector<32x256xf32>
    %19 = vector.broadcast %16 : vector<1x256xf32> to vector<32x256xf32>
    %20 = arith.mulf %18, %19 : vector<32x256xf32>
    %c0_6 = arith.constant 0 : index
    %c0_7 = arith.constant 0 : index
    %21 = vector.load %arg2[%c0_6, %c0_7] : memref<32x1xf32, #tpu.memory_space<vmem>>, vector<32x1xf32>
    %22 = vector.broadcast %21 : vector<32x1xf32> to vector<32x256xf32>
    %23 = arith.mulf %20, %22 : vector<32x256xf32>
    %c0_8 = arith.constant 0 : index
    %c0_9 = arith.constant 0 : index
    %24 = vector.load %arg3[%c0_8, %c0_9] : memref<32x1xf32, #tpu.memory_space<vmem>>, vector<32x1xf32>
    %25 = vector.broadcast %24 : vector<32x1xf32> to vector<32x256xf32>
    %26 = arith.addf %23, %25 : vector<32x256xf32>
    %c0_10 = arith.constant 0 : index
    %c0_11 = arith.constant 0 : index
    %27 = vector.load %arg4[%c0_10, %c0_11] : memref<32x256xf32, #tpu.memory_space<vmem>>, vector<32x256xf32>
    tpu.vector_store %arg4[%c0_10, %c0_11], %26 {strides = array<i32>} : memref<32x256xf32, #tpu.memory_space<vmem>>, vector<32x256xf32>,
    return
  }
  func.func @transform_0(%arg0: i32) -> (i32, i32) {
    %c0_i32 = arith.constant 0 : i32
    %c0_i32_0 = arith.constant 0 : i32
    return %c0_i32, %arg0 : i32, i32
  }
  func.func @transform_1(%arg0: i32) -> (i32, i32) {
    %c0_i32 = arith.constant 0 : i32
    %c0_i32_0 = arith.constant 0 : i32
    %c0_i32_1 = arith.constant 0 : i32
    return %c0_i32, %c0_i32_0 : i32, i32
  }
  func.func @transform_2(%arg0: i32) -> (i32, i32) {
    %c0_i32 = arith.constant 0 : i32
    %c0_i32_0 = arith.constant 0 : i32
    %c0_i32_1 = arith.constant 0 : i32
    return %c0_i32, %c0_i32_0 : i32, i32
  }
  func.func @transform_3(%arg0: i32) -> (i32, i32) {
    %c0_i32 = arith.constant 0 : i32
    %c0_i32_0 = arith.constant 0 : i32
    return %c0_i32, %arg0 : i32, i32
  }
}

</mosaic_0001>

<llo_original>
// kernel: tpu_custom_call.1
$region0: #{tpu_custom_call.1}
  #allocation0 [shape = 'u32[]', space=smem, size = 0x4, offset = 0x4, fixed_abs, tag = 'smem constant byte address 0x4 - core index']
  #allocation1 [shape = 'u32[144,128]{1,0:T(1,128)}', space=vmem, size = 0x12000, scoped, tag = 'internal scratch']
  %s0 = inlined_call_operand.vmem [shape: f32[32,256], index: 0, kind: input, shape index: {}]
  %s1 = inlined_call_operand.vmem [shape: f32[32,1], index: 1, kind: input, shape index: {}]
  %s2 = inlined_call_operand.vmem [shape: f32[32,1], index: 2, kind: input, shape index: {}]
  %s3 = inlined_call_operand.hbm [shape: f32[32,256], index: 3, kind: output, shape index: {}]
  %s4 = sld [smem:[#allocation0]]
  $region22: #{tpu_custom_call.1} parent=0
    _
  %s6 = ssub.s32 1, %s4
  %s7 = scalar_select 0, %s6, %s4
  $region1: #{tpu_custom_call.1} parent=0
    #allocation2 [shape = 'u8[32768]{0}', space=vmem, size = 0x8000, scoped, tag = 'output window, operand 0, single buffered']
    #allocation3 [shape = 's32[1]{0}', space=sflag, size = 0x4, scoped, tag = 'scoped memory for tpu_custom_call.1']
    %8 = vsyncpa [#allocation3], 0
    // Predicated region
    $region2: #{tpu_custom_call.1} parent=1 // pred_check
      _
    $region3: #{tpu_custom_call.1} parent=1 // pred_check_branch
      %10 = sbr.rel (0) target = $region5
    $region4: #{tpu_custom_call.1} parent=1 // pred_region
      _
    $region5: #{tpu_custom_call.1} parent=1 // pred_fallthru
      _
    // Predicated region
    $region6: #{tpu_custom_call.1} parent=1 // pred_check
      _
    $region7: #{tpu_custom_call.1} parent=1 // pred_check_branch
      %12 = sbr.rel (0) target = $region9
    $region8: #{tpu_custom_call.1} parent=1 // pred_region
      _
    $region9: #{tpu_custom_call.1} parent=1 // pred_fallthru
      _
    // Predicated region
    $region10: #{tpu_custom_call.1} parent=1 // pred_check
      _
    $region11: #{tpu_custom_call.1} parent=1 // pred_check_branch
      %14 = sbr.rel (0) target = $region13
    $region12: #{tpu_custom_call.1} parent=1 // pred_region
      _
    $region13: #{tpu_custom_call.1} parent=1 // pred_fallthru
      _
    %v15 = vld [vmem:[%s0] sm:$0xff]
    %v16 = vld [vmem:[%s0 + $0x8] sm:$0xff]
    %v17 = vld [vmem:[%s0 + $0x10] sm:$0xff]
    %v18 = vld [vmem:[%s0 + $0x18] sm:$0xff]
    %v19 = vld [vmem:[%s0 + $0x20] sm:$0xff]
    %v20 = vld [vmem:[%s0 + $0x28] sm:$0xff]
    %v21 = vld [vmem:[%s0 + $0x30] sm:$0xff]
    %v22 = vld [vmem:[%s0 + $0x38] sm:$0xff]
    %v23 = vadd.f32 %v15, %v17
    %v24 = vadd.f32 %v23, %v19
    %v25 = vadd.f32 %v24, %v21
    %v26 = vrot.slane %v25, 4
    %v27 = vadd.f32 %v25, %v26
    %v28 = vrot.slane %v27, 2
    %v29 = vadd.f32 %v27, %v28
    %v30 = vrot.slane %v29, 1
    %v31 = vadd.f32 %v29, %v30
    %v32 = vadd.f32 %v16, %v18
    %v33 = vadd.f32 %v32, %v20
    %v34 = vadd.f32 %v33, %v22
    %v35 = vrot.slane %v34, 4
    %v36 = vadd.f32 %v34, %v35
    %v37 = vrot.slane %v36, 2
    %v38 = vadd.f32 %v36, %v37
    %v39 = vrot.slane %v38, 1
    %v40 = vadd.f32 %v38, %v39
    %v41 = vmul.f32 %v15, %v15
    %v42 = vmul.f32 %v16, %v16
    %v43 = vmul.f32 %v17, %v17
    %v44 = vmul.f32 %v18, %v18
    %v45 = vmul.f32 %v19, %v19
    %v46 = vmul.f32 %v20, %v20
    %v47 = vmul.f32 %v21, %v21
    %v48 = vmul.f32 %v22, %v22
    %v49 = vadd.f32 %v41, %v43
    %v50 = vadd.f32 %v49, %v45
    %v51 = vadd.f32 %v50, %v47
    %v52 = vrot.slane %v51, 4
    %v53 = vadd.f32 %v51, %v52
    %v54 = vrot.slane %v53, 2
    %v55 = vadd.f32 %v53, %v54
    %v56 = vrot.slane %v55, 1
    %v57 = vadd.f32 %v55, %v56
    %v58 = vadd.f32 %v42, %v44
    %v59 = vadd.f32 %v58, %v46
    %v60 = vadd.f32 %v59, %v48
    %v61 = vrot.slane %v60, 4
    %v62 = vadd.f32 %v60, %v61
    %v63 = vrot.slane %v62, 2
    %v64 = vadd.f32 %v62, %v63
    %v65 = vrot.slane %v64, 1
    %v66 = vadd.f32 %v64, %v65
    %v67 = vmul.f32 %v31, 0.03125
    %v68 = vmul.f32 %v40, 0.03125
    %v69 = vmul.f32 %v57, 0.03125
    %v70 = vmul.f32 %v66, 0.03125
    %v71 = vmul.f32 %v67, %v67
    %v72 = vmul.f32 %v68, %v68
    %v73 = vsub.f32 %v69, %v71
    %v74 = vsub.f32 %v70, %v72
    %v75 = vmax.f32 %v73, 0.0
    %v76 = vmax.f32 %v74, 0.0
    %v77 = vadd.f32 %v75, 1e-05
    %v78 = vadd.f32 %v76, 1e-05
    %v79 = vrsqrt.pop %v77
    %v80 = vrsqrt.pop %v78
    %v81 = vsub.f32 %v15, %v67
    %v82 = vsub.f32 %v16, %v68
    %v83 = vsub.f32 %v17, %v67
    %v84 = vsub.f32 %v18, %v68
    %v85 = vsub.f32 %v19, %v67
    %v86 = vsub.f32 %v20, %v68
    %v87 = vsub.f32 %v21, %v67
    %v88 = vsub.f32 %v22, %v68
    %v89 = vmul.f32 %v81, %v79
    %v90 = vmul.f32 %v82, %v80
    %v91 = vmul.f32 %v83, %v79
    %v92 = vmul.f32 %v84, %v80
    %v93 = vmul.f32 %v85, %v79
    %v94 = vmul.f32 %v86, %v80
    %v95 = vmul.f32 %v87, %v79
    %v96 = vmul.f32 %v88, %v80
    %v97 = vld [vmem:[%s1] sm:$0xff]
    %v98 = vld [vmem:[%s1 + $0x8] sm:$0xff]
    %v99 = vld [vmem:[%s1 + $0x10] sm:$0xff]
    %v100 = vld [vmem:[%s1 + $0x18] sm:$0xff]
    %102 = vset.pattern.permute.xlu0 0
    %103 = vperm.xlu0 %102, %v97
    %v104 = vpop.permute.xlu0 %103
    %107 = vset.pattern.permute.xlu0 0
    %108 = vperm.xlu0 %107, %v98
    %v109 = vpop.permute.xlu0 %108
    %112 = vset.pattern.permute.xlu0 0
    %113 = vperm.xlu0 %112, %v99
    %v114 = vpop.permute.xlu0 %113
    %117 = vset.pattern.permute.xlu0 0
    %118 = vperm.xlu0 %117, %v100
    %v119 = vpop.permute.xlu0 %118
    %v121 = vmul.f32 %v89, %v104
    %v122 = vmul.f32 %v90, %v104
    %v123 = vmul.f32 %v91, %v109
    %v124 = vmul.f32 %v92, %v109
    %v125 = vmul.f32 %v93, %v114
    %v126 = vmul.f32 %v94, %v114
    %v127 = vmul.f32 %v95, %v119
    %v128 = vmul.f32 %v96, %v119
    %v129 = vld [vmem:[%s2] sm:$0xff]
    %v130 = vld [vmem:[%s2 + $0x8] sm:$0xff]
    %v131 = vld [vmem:[%s2 + $0x10] sm:$0xff]
    %v132 = vld [vmem:[%s2 + $0x18] sm:$0xff]
    %134 = vset.pattern.permute.xlu0 0
    %135 = vperm.xlu0 %134, %v129
    %v136 = vpop.permute.xlu0 %135
    %139 = vset.pattern.permute.xlu0 0
    %140 = vperm.xlu0 %139, %v130
    %v141 = vpop.permute.xlu0 %140
    %144 = vset.pattern.permute.xlu0 0
    %145 = vperm.xlu0 %144, %v131
    %v146 = vpop.permute.xlu0 %145
    %149 = vset.pattern.permute.xlu0 0
    %150 = vperm.xlu0 %149, %v132
    %v151 = vpop.permute.xlu0 %150
    %v153 = vadd.f32 %v121, %v136
    %v154 = vadd.f32 %v122, %v136
    %v155 = vadd.f32 %v123, %v141
    %v156 = vadd.f32 %v124, %v141
    %v157 = vadd.f32 %v125, %v146
    %v158 = vadd.f32 %v126, %v146
    %v159 = vadd.f32 %v127, %v151
    %v160 = vadd.f32 %v128, %v151
    %161 = vst [vmem:[#allocation2] sm:$0xff] %v153
    %162 = vst [vmem:[#allocation2 + $0x8] sm:$0xff] %v154
    %163 = vst [vmem:[#allocation2 + $0x10] sm:$0xff] %v155
    %164 = vst [vmem:[#allocation2 + $0x18] sm:$0xff] %v156
    %165 = vst [vmem:[#allocation2 + $0x20] sm:$0xff] %v157
    %166 = vst [vmem:[#allocation2 + $0x28] sm:$0xff] %v158
    %167 = vst [vmem:[#allocation2 + $0x30] sm:$0xff] %v159
    %168 = vst [vmem:[#allocation2 + $0x38] sm:$0xff] %v160
    // Predicated region
    $region14: #{tpu_custom_call.1} parent=1 // pred_check
      _
    $region15: #{tpu_custom_call.1} parent=1 // pred_check_branch
      %170 = sbr.rel (0) target = $region17
    $region16: #{tpu_custom_call.1} parent=1 // pred_region
      %s172 = ssub.s32 1024, 1024
      %173 = vsyncadd [#allocation3], %s172
      %s174 = sshll.u32 [#allocation2], 4
      %s175 = int_to_ptr.vmem [resolvable:$true] %s174
      %180 = dma.vmem_to_hbm [thread:$0]  %s175, 1024, %s3, [#allocation3], 256, 256, 16
    $region17: #{tpu_custom_call.1} parent=1 // pred_fallthru
      _
    // Predicated region
    $region18: #{tpu_custom_call.1} parent=1 // pred_check
      _
    $region19: #{tpu_custom_call.1} parent=1 // pred_check_branch
      %182 = sbr.rel (0) target = $region21
    $region20: #{tpu_custom_call.1} parent=1 // pred_region
      %183 = dma.done [#allocation3], 1024
    $region21: #{tpu_custom_call.1} parent=1 // pred_fallthru
      _
    %184 = vsyncpa [#allocation3], 1

</llo_original>
